<compile_context>
chip_gen: v7x
topology: tpu7x:2x2x1
jax: 0.10.0
libtpu: 0.0.40
codegen_flags: <defaults>
</compile_context>

<pallas_src>
import jax
import jax.numpy as jnp
from jax.experimental import pallas as pl
from jax.experimental.pallas import tpu as pltpu


# ----------------------------------------------------------------------------
# Fused kernel: o[s] += ((x - mean) * inv_std).bf16 @ W ; o[0] += b at last K
# ----------------------------------------------------------------------------
def _fused_norm_linear_kernel(x_ref, mean_ref, inv_std_ref, w_ref, b_ref, o_ref):
    # x_ref:       (N, TK)     activation row-chunk (flattened NCHW, f32)
    # mean_ref:    (1, TK)     per-column (per-channel, repeated) mean
    # inv_std_ref: (1, TK)     per-column 1/std (0 in K-padding => zero contrib)
    # w_ref:       (TK, OP)    bf16 weight K-chunk (OP = O padded to 128)
    # b_ref:       (1, OP)     f32 bias (padded)
    # o_ref:       (1, N, OP)  f32 partial-output block, resident across K axis
    s = pl.program_id(0)
    k = pl.program_id(1)

    @pl.when(k == 0)
    def _():
        o_ref[...] = jnp.zeros_like(o_ref)

    # Normalize in-register (pure VPU mul/add, hidden under the W DMA), then
    # cast to the MXU-native weight dtype; accumulate in f32 into o_ref.
    a_norm = ((x_ref[...] - mean_ref[...]) * inv_std_ref[...]).astype(w_ref.dtype)
    partial = jnp.dot(a_norm, w_ref[...], preferred_element_type=jnp.float32)
    o_ref[...] += partial[None, :, :]

    @pl.when((k == pl.num_programs(1) - 1) & (s == 0))
    def _():
        o_ref[...] += b_ref[...][None, :, :]


# ----------------------------------------------------------------------------
# Block-size selection
# ----------------------------------------------------------------------------
_SMALL_W_BYTES = 2 * 1024 * 1024          # single-step fast-path threshold
_VMEM_BLOCK_BUDGET = 20 * 1024 * 1024     # double-buffered streaming blocks


def _pick_block_k(k_per_split, op, w_bytes, n_rows):
    """Largest K block that divides k_per_split and fits the VMEM budget."""
    for tk in (2048, 1024, 512, 256, 128):
        if k_per_split % tk != 0:
            continue
        # double-buffered: W chunk + x chunk + mean/inv_std chunks
        need = 2 * (tk * op * w_bytes + n_rows * tk * 4 + 2 * tk * 4)
        if need <= _VMEM_BLOCK_BUDGET:
            return tk
    return 128  # k_per_split is guaranteed a multiple of 128 by the wrapper


def fused_norm_linear(a, mean_cols, inv_std_cols, w_pad, b_pad, num_splits):
    """a: (N, K) f32; mean/inv_std: (1, K) f32; w_pad: (K, OP) bf16;
    b_pad: (1, OP) f32.  K is a multiple of num_splits * 128.
    Returns (num_splits, N, OP) f32 partial sums (bias folded into split 0)."""
    N, K = a.shape
    OP = w_pad.shape[1]
    w_bytes = jnp.dtype(w_pad.dtype).itemsize
    k_per_split = K // num_splits

    if num_splits == 1 and K * OP * w_bytes <= _SMALL_W_BYTES:
        tk = k_per_split                      # everything resident, one step
    else:
        tk = _pick_block_k(k_per_split, OP, w_bytes, N)
    steps_per_split = k_per_split // tk
    grid = (num_splits, steps_per_split)

    col_map = lambda s, k: (0, s * steps_per_split + k)
    row_map = lambda s, k: (s * steps_per_split + k, 0)

    return pl.pallas_call(
        _fused_norm_linear_kernel,
        out_shape=jax.ShapeDtypeStruct((num_splits, N, OP), jnp.float32),
        grid_spec=pltpu.PrefetchScalarGridSpec(
            num_scalar_prefetch=0,
            grid=grid,
            in_specs=[
                pl.BlockSpec((N, tk), col_map),     # x rows
                pl.BlockSpec((1, tk), col_map),     # mean cols
                pl.BlockSpec((1, tk), col_map),     # inv_std cols
                pl.BlockSpec((tk, OP), row_map),    # W chunk (bf16)
                pl.BlockSpec((1, OP), lambda s, k: (0, 0)),   # bias
            ],
            out_specs=pl.BlockSpec((1, N, OP), lambda s, k: (s, 0, 0)),
        ),
        compiler_params=pltpu.CompilerParams(
            # Split axis shards across v7x's 2 TCs; K reduction axis is last.
            dimension_semantics=("parallel", "arbitrary"),
            vmem_limit_bytes=32 * 1024 * 1024,
        ),
    )(a, mean_cols, inv_std_cols, w_pad, b_pad)


# ----------------------------------------------------------------------------
# Wrapper: full Normalization.forward
# ----------------------------------------------------------------------------
def normalization_forward(x, mean, std, w, b):
    """x: (N, C, H, W) NCHW f32; mean/std: (C,); w: (C*H*W, O); b: (O,)."""
    N, C, H, W_dim = x.shape
    K = C * H * W_dim
    O = w.shape[1]

    # Glue: flatten per sample (row-major NCHW => column k maps to channel
    # k // (H*W), matching PyTorch's (1, C, 1, 1) broadcast exactly).
    a = x.reshape(N, K).astype(jnp.float32)
    mean_cols = jnp.repeat(mean.astype(jnp.float32), H * W_dim).reshape(1, K)
    inv_std_cols = jnp.repeat(1.0 / std.astype(jnp.float32), H * W_dim).reshape(1, K)

    # Lane-dense output padding (unmasked vst).
    OP = max(128, ((O + 127) // 128) * 128)

    # Parallel-split decision (v7x 2 TCs) based on the bf16 weight footprint.
    w_bytes = 2  # bf16
    num_splits = 1 if K * OP * w_bytes <= _SMALL_W_BYTES else 2

    # Pad K so each split tiles cleanly into multiples of 128.  Padded
    # inv_std columns are 0, so padded columns contribute exactly 0.
    kmul = num_splits * 128
    K_pad = ((K + kmul - 1) // kmul) * kmul

    a_p = jnp.zeros((N, K_pad), jnp.float32).at[:, :K].set(a)
    mean_p = jnp.zeros((1, K_pad), jnp.float32).at[:, :K].set(mean_cols)
    inv_std_p = jnp.zeros((1, K_pad), jnp.float32).at[:, :K].set(inv_std_cols)
    w_p = jnp.zeros((K_pad, OP), jnp.bfloat16).at[:K, :O].set(
        w.astype(jnp.bfloat16))
    b_p = jnp.zeros((1, OP), jnp.float32).at[0, :O].set(b.astype(jnp.float32))

    out_partials = fused_norm_linear(a_p, mean_p, inv_std_p, w_p, b_p, num_splits)
    out = out_partials.sum(axis=0)        # (N, OP); bias lives in split 0
    return out[:, :O]


if __name__ == "__main__":
    key = jax.random.PRNGKey(0)
    kx, km, ks, kw, kb = jax.random.split(key, 5)

    N, C, H, Wd = 2, 4, 16, 16
    OUT = 10
    K = C * H * Wd

    x = jax.random.normal(kx, (N, C, H, Wd), dtype=jnp.float32)
    mean = jax.random.normal(km, (C,), dtype=jnp.float32) * 0.1
    std = jax.random.uniform(ks, (C,), dtype=jnp.float32, minval=0.5, maxval=1.5)
    w = jax.random.normal(kw, (K, OUT), dtype=jnp.float32) * 0.02
    b = jax.random.normal(kb, (OUT,), dtype=jnp.float32) * 0.01

    out = normalization_forward(x, mean, std, w, b)
    out = jax.block_until_ready(out)
    assert out.shape == (N, OUT), out.shape

    # Pure-JAX references mirroring the PyTorch semantics (mean/std broadcast
    # as (1, C, 1, 1) over NCHW, then the linear "model").
    xn = (x - mean.reshape(1, C, 1, 1)) / std.reshape(1, C, 1, 1)
    a_ref = xn.reshape(N, K)

    # (1) Tight check against a bf16-weight-emulated reference (matches the
    #     kernel's bf16 products + f32 accumulation).
    ref_bf16 = jnp.dot(a_ref.astype(jnp.bfloat16).astype(jnp.float32),
                       w.astype(jnp.bfloat16).astype(jnp.float32),
                       precision=jax.lax.Precision.HIGHEST) + b
    assert jnp.allclose(out, ref_bf16, atol=3e-3, rtol=3e-3), \
        "mismatch vs bf16-emulated reference"

    # (2) Loose check against the full-f32 PyTorch-semantics reference
    #     (bf16 weight stream introduces ~0.4% product rounding).
    ref_f32 = a_ref @ w + b
    assert jnp.allclose(out, ref_f32, atol=5e-2, rtol=5e-2), \
        "mismatch vs f32 reference"

    print("KERNEL_OK")
</pallas_src>

<mosaic_0001>
module attributes {stable_mosaic.version = 11 : i64} {
  func.func @_fused_norm_linear_kernel(%arg0: i32, %arg1: i32, %arg2: memref<2x1024xf32, #tpu.memory_space<vmem>>, %arg3: memref<1x1024xf32, #tpu.memory_space<vmem>>, %arg4: memref<1x1024xf32, #tpu.memory_space<vmem>>, %arg5: memref<1024x128xbf16, #tpu.memory_space<vmem>>, %arg6: memref<1x128xf32, #tpu.memory_space<vmem>>, %arg7: memref<1x2x128xf32, #tpu.memory_space<vmem>>) attributes {dimension_semantics = [#tpu.dimension_semantics<parallel>, #tpu.dimension_semantics<arbitrary>], iteration_bounds = array<i64: 1, 1>, scalar_prefetch = 0 : i64, scratch_operands = 0 : i64, tpu.core_type = #tpu.core_type<tc>, window_params = [{transform_indices = @transform_0, window_bounds = array<i64: 2, 1024>}, {transform_indices = @transform_1, window_bounds = array<i64: 1, 1024>}, {transform_indices = @transform_2, window_bounds = array<i64: 1, 1024>}, {transform_indices = @transform_3, window_bounds = array<i64: 1024, 128>}, {pipeline_mode = #tpu.pipeline_mode<synchronous>, transform_indices = @transform_4, window_bounds = array<i64: 1, 128>}, {transform_indices = @transform_5, window_bounds = array<i64: 1, 2, 128>}]} {
    %c0_i32 = arith.constant 0 : i32
    %0 = arith.cmpi eq, %arg1, %c0_i32 : i32
    %1 = arith.extui %0 : i1 to i32
    %c0_i32_0 = arith.constant 0 : i32
    %2 = arith.cmpi ne, %1, %c0_i32_0 : i32
    scf.if %2 {
      %cst_17 = arith.constant 0.000000e+00 : f32
      %22 = vector.broadcast %cst_17 : f32 to vector<1x2x128xf32>
      %c0_18 = arith.constant 0 : index
      %c0_19 = arith.constant 0 : index
      %c0_20 = arith.constant 0 : index
      %23 = vector.load %arg7[%c0_18, %c0_19, %c0_20] : memref<1x2x128xf32, #tpu.memory_space<vmem>>, vector<1x2x128xf32>
      tpu.vector_store %arg7[%c0_18, %c0_19, %c0_20], %22 {strides = array<i32>} : memref<1x2x128xf32, #tpu.memory_space<vmem>>, vector<1x2x128xf32>,
    } else {
    }
    %c0 = arith.constant 0 : index
    %c0_1 = arith.constant 0 : index
    %3 = vector.load %arg2[%c0, %c0_1] : memref<2x1024xf32, #tpu.memory_space<vmem>>, vector<2x1024xf32>
    %c0_2 = arith.constant 0 : index
    %c0_3 = arith.constant 0 : index
    %4 = vector.load %arg3[%c0_2, %c0_3] : memref<1x1024xf32, #tpu.memory_space<vmem>>, vector<1x1024xf32>
    %5 = vector.broadcast %4 : vector<1x1024xf32> to vector<2x1024xf32>
    %6 = arith.subf %3, %5 : vector<2x1024xf32>
    %c0_4 = arith.constant 0 : index
    %c0_5 = arith.constant 0 : index
    %7 = vector.load %arg4[%c0_4, %c0_5] : memref<1x1024xf32, #tpu.memory_space<vmem>>, vector<1x1024xf32>
    %8 = vector.broadcast %7 : vector<1x1024xf32> to vector<2x1024xf32>
    %9 = arith.mulf %6, %8 : vector<2x1024xf32>
    %10 = arith.truncf %9 : vector<2x1024xf32> to vector<2x1024xbf16>
    %c0_6 = arith.constant 0 : index
    %c0_7 = arith.constant 0 : index
    %11 = vector.load %arg5[%c0_6, %c0_7] : memref<1024x128xbf16, #tpu.memory_space<vmem>>, vector<1024x128xbf16>
    %cst = arith.constant dense<0.000000e+00> : vector<2x128xf32>
    %12 = tpu.matmul %10, %11, %cst {dimension_numbers = #tpu.dot_dimension_numbers<[1], [0], [0], [1], [0, 0, 1, 1], [], []>} : vector<2x1024xbf16>, vector<1024x128xbf16>, vector<2x128xf32> -> vector<2x128xf32>
    %c0_8 = arith.constant 0 : index
    %c0_9 = arith.constant 0 : index
    %c0_10 = arith.constant 0 : index
    %13 = vector.load %arg7[%c0_8, %c0_9, %c0_10] : memref<1x2x128xf32, #tpu.memory_space<vmem>>, vector<1x2x128xf32>
    %14 = vector.shape_cast %12 : vector<2x128xf32> to vector<1x2x128xf32>
    %15 = arith.addf %13, %14 : vector<1x2x128xf32>
    %c0_11 = arith.constant 0 : index
    %c0_12 = arith.constant 0 : index
    %c0_13 = arith.constant 0 : index
    %16 = vector.load %arg7[%c0_11, %c0_12, %c0_13] : memref<1x2x128xf32, #tpu.memory_space<vmem>>, vector<1x2x128xf32>
    tpu.vector_store %arg7[%c0_11, %c0_12, %c0_13], %15 {strides = array<i32>} : memref<1x2x128xf32, #tpu.memory_space<vmem>>, vector<1x2x128xf32>,
    %c0_i32_14 = arith.constant 0 : i32
    %17 = arith.cmpi eq, %arg1, %c0_i32_14 : i32
    %c0_i32_15 = arith.constant 0 : i32
    %18 = arith.cmpi eq, %arg0, %c0_i32_15 : i32
    %19 = arith.andi %17, %18 : i1
    %20 = arith.extui %19 : i1 to i32
    %c0_i32_16 = arith.constant 0 : i32
    %21 = arith.cmpi ne, %20, %c0_i32_16 : i32
    scf.if %21 {
      %c0_17 = arith.constant 0 : index
      %c0_18 = arith.constant 0 : index
      %c0_19 = arith.constant 0 : index
      %22 = vector.load %arg7[%c0_17, %c0_18, %c0_19] : memref<1x2x128xf32, #tpu.memory_space<vmem>>, vector<1x2x128xf32>
      %c0_20 = arith.constant 0 : index
      %c0_21 = arith.constant 0 : index
      %23 = vector.load %arg6[%c0_20, %c0_21] : memref<1x128xf32, #tpu.memory_space<vmem>>, vector<1x128xf32>
      %24 = vector.shape_cast %23 : vector<1x128xf32> to vector<1x1x128xf32>
      %25 = vector.broadcast %24 : vector<1x1x128xf32> to vector<1x2x128xf32>
      %26 = arith.addf %22, %25 : vector<1x2x128xf32>
      %c0_22 = arith.constant 0 : index
      %c0_23 = arith.constant 0 : index
      %c0_24 = arith.constant 0 : index
      %27 = vector.load %arg7[%c0_22, %c0_23, %c0_24] : memref<1x2x128xf32, #tpu.memory_space<vmem>>, vector<1x2x128xf32>
      tpu.vector_store %arg7[%c0_22, %c0_23, %c0_24], %26 {strides = array<i32>} : memref<1x2x128xf32, #tpu.memory_space<vmem>>, vector<1x2x128xf32>,
    } else {
    }
    return
  }
  func.func @transform_0(%arg0: i32, %arg1: i32) -> (i32, i32) {
    %c1_i32 = arith.constant 1 : i32
    %0 = arith.muli %arg0, %c1_i32 : i32
    %1 = arith.addi %0, %arg1 : i32
    %c0_i32 = arith.constant 0 : i32
    %c0_i32_0 = arith.constant 0 : i32
    return %c0_i32, %1 : i32, i32
  }
  func.func @transform_1(%arg0: i32, %arg1: i32) -> (i32, i32) {
    %c1_i32 = arith.constant 1 : i32
    %0 = arith.muli %arg0, %c1_i32 : i32
    %1 = arith.addi %0, %arg1 : i32
    %c0_i32 = arith.constant 0 : i32
    %c0_i32_0 = arith.constant 0 : i32
    return %c0_i32, %1 : i32, i32
  }
  func.func @transform_2(%arg0: i32, %arg1: i32) -> (i32, i32) {
    %c1_i32 = arith.constant 1 : i32
    %0 = arith.muli %arg0, %c1_i32 : i32
    %1 = arith.addi %0, %arg1 : i32
    %c0_i32 = arith.constant 0 : i32
    %c0_i32_0 = arith.constant 0 : i32
    return %c0_i32, %1 : i32, i32
  }
  func.func @transform_3(%arg0: i32, %arg1: i32) -> (i32, i32) {
    %c1_i32 = arith.constant 1 : i32
    %0 = arith.muli %arg0, %c1_i32 : i32
    %1 = arith.addi %0, %arg1 : i32
    %c0_i32 = arith.constant 0 : i32
    %c0_i32_0 = arith.constant 0 : i32
    return %1, %c0_i32 : i32, i32
  }
  func.func @transform_4(%arg0: i32, %arg1: i32) -> (i32, i32) {
    %c0_i32 = arith.constant 0 : i32
    %c0_i32_0 = arith.constant 0 : i32
    %c0_i32_1 = arith.constant 0 : i32
    return %c0_i32, %c0_i32_0 : i32, i32
  }
  func.func @transform_5(%arg0: i32, %arg1: i32) -> (i32, i32, i32) {
    %c0_i32 = arith.constant 0 : i32
    %c0_i32_0 = arith.constant 0 : i32
    %c0_i32_1 = arith.constant 0 : i32
    return %arg0, %c0_i32, %c0_i32_0 : i32, i32, i32
  }
}

</mosaic_0001>

<llo_original>
// kernel: tpu_custom_call.1
$region0: #{tpu_custom_call.1}
  #allocation0 [shape = 'u32[]', space=smem, size = 0x4, offset = 0x4, fixed_abs, tag = 'smem constant byte address 0x4 - core index']
  #allocation1 [shape = 'u32[144,128]{1,0:T(1,128)}', space=vmem, size = 0x12000, scoped, tag = 'internal scratch']
  %s0 = inlined_call_operand.hbm [shape: f32[2,1024], index: 0, kind: input, shape index: {}]
  %s1 = inlined_call_operand.hbm [shape: f32[1,1024], index: 1, kind: input, shape index: {}]
  %s2 = inlined_call_operand.hbm [shape: f32[1,1024], index: 2, kind: input, shape index: {}]
  %s3 = inlined_call_operand.hbm [shape: bf16[1024,128], index: 3, kind: input, shape index: {}]
  %s4 = inlined_call_operand.vmem [shape: f32[1,128], index: 4, kind: input, shape index: {}]
  %s5 = inlined_call_operand.hbm [shape: f32[1,2,128], index: 5, kind: output, shape index: {}]
  %s6 = sld [smem:[#allocation0]]
  $region54: #{tpu_custom_call.1} parent=0
    _
  %s8 = ssub.s32 1, %s6
  %s9 = scalar_select 0, %s8, %s6
  $region1: #{tpu_custom_call.1} parent=0
    #allocation2 [shape = 'u8[8192]{0}', space=vmem, size = 0x2000, scoped, tag = 'input window, operand 0, single buffered']
    #allocation3 [shape = 's32[1]{0}', space=sflag, size = 0x4, scoped, tag = 'scoped memory for tpu_custom_call.1']
    #allocation4 [shape = 's32[1]{0}', space=sflag, size = 0x4, scoped, tag = 'scoped memory for tpu_custom_call.1']
    #allocation5 [shape = 'u8[4096]{0}', space=vmem, size = 0x1000, scoped, tag = 'input window, operand 1, single buffered']
    #allocation6 [shape = 's32[1]{0}', space=sflag, size = 0x4, scoped, tag = 'scoped memory for tpu_custom_call.1']
    #allocation7 [shape = 'u8[4096]{0}', space=vmem, size = 0x1000, scoped, tag = 'input window, operand 2, single buffered']
    #allocation8 [shape = 'u8[262144]{0}', space=vmem, size = 0x40000, scoped, tag = 'input window, operand 3, single buffered']
    #allocation9 [shape = 's32[1]{0}', space=sflag, size = 0x4, scoped, tag = 'scoped memory for tpu_custom_call.1']
    #allocation10 [shape = 'u8[1024]{0}', space=vmem, size = 0x400, scoped, tag = 'output window, operand 0, single buffered']
    %10 = vsyncpa [#allocation3], 0
    %11 = vsyncpa [#allocation6], 0
    %12 = vsyncpa [#allocation9], 0
    %13 = vsyncpa [#allocation4], 0
    // Predicated region
    $region2: #{tpu_custom_call.1} parent=1 // pred_check
      _
    $region3: #{tpu_custom_call.1} parent=1 // pred_check_branch
      %15 = sbr.rel (0) target = $region5
    $region4: #{tpu_custom_call.1} parent=1 // pred_region
      %s16 = sadd.s32 0, 0
      %s17 = smul.u32 8, %s16
      %s19 = ssub.s32 256, 256
      %20 = vsyncadd [#allocation3], %s19
      %s21 = smul.addr %s17, 32
      %s22 = scalar_lea.hbm %s0, %s21
      %s24 = sshll.u32 [#allocation2], 4
      %s25 = int_to_ptr.vmem [resolvable:$true] %s24
      %27 = dma.hbm_to_vmem [thread:$0]  %s22, 256, %s25, [#allocation3]
    $region5: #{tpu_custom_call.1} parent=1 // pred_fallthru
      _
    // Predicated region
    $region6: #{tpu_custom_call.1} parent=1 // pred_check
      _
    $region7: #{tpu_custom_call.1} parent=1 // pred_check_branch
      %29 = sbr.rel (0) target = $region9
    $region8: #{tpu_custom_call.1} parent=1 // pred_region
      %s30 = sadd.s32 0, 0
      %s31 = smul.u32 8, %s30
      %s33 = ssub.s32 128, 128
      %34 = vsyncadd [#allocation6], %s33
      %s35 = smul.addr %s31, 16
      %s36 = scalar_lea.hbm %s1, %s35
      %s38 = sshll.u32 [#allocation5], 4
      %s39 = int_to_ptr.vmem [resolvable:$true] %s38
      %41 = dma.hbm_to_vmem [thread:$0]  %s36, 128, %s39, [#allocation6]
    $region9: #{tpu_custom_call.1} parent=1 // pred_fallthru
      _
    // Predicated region
    $region10: #{tpu_custom_call.1} parent=1 // pred_check
      _
    $region11: #{tpu_custom_call.1} parent=1 // pred_check_branch
      %43 = sbr.rel (0) target = $region13
    $region12: #{tpu_custom_call.1} parent=1 // pred_region
      %s44 = sadd.s32 0, 0
      %s45 = smul.u32 8, %s44
      %s47 = ssub.s32 128, 128
      %48 = vsyncadd [#allocation6], %s47
      %s49 = smul.addr %s45, 16
      %s50 = scalar_lea.hbm %s2, %s49
      %s52 = sshll.u32 [#allocation7], 4
      %s53 = int_to_ptr.vmem [resolvable:$true] %s52
      %55 = dma.hbm_to_vmem [thread:$0]  %s50, 128, %s53, [#allocation6]
    $region13: #{tpu_custom_call.1} parent=1 // pred_fallthru
      _
    // Predicated region
    $region14: #{tpu_custom_call.1} parent=1 // pred_check
      _
    $region15: #{tpu_custom_call.1} parent=1 // pred_check_branch
      %57 = sbr.rel (0) target = $region17
    $region16: #{tpu_custom_call.1} parent=1 // pred_region
      %s58 = sadd.s32 0, 0
      %s59 = smul.u32 128, %s58
      %s61 = ssub.s32 8192, 8192
      %62 = vsyncadd [#allocation9], %s61
      %s63 = smul.addr %s59, 64
      %s64 = scalar_lea.hbm %s3, %s63
      %s65 = sshll.u32 [#allocation8], 4
      %s66 = int_to_ptr.vmem [resolvable:$true] %s65
      %71 = dma.hbm_to_vmem [thread:$0]  %s64, 8192, %s66, [#allocation9], 64, 64, 4
    $region17: #{tpu_custom_call.1} parent=1 // pred_fallthru
      _
    // Predicated region
    $region18: #{tpu_custom_call.1} parent=1 // pred_check
      _
    $region19: #{tpu_custom_call.1} parent=1 // pred_check_branch
      %73 = sbr.rel (0) target = $region21
    $region20: #{tpu_custom_call.1} parent=1 // pred_region
      _
    $region21: #{tpu_custom_call.1} parent=1 // pred_fallthru
      _
    // Predicated region
    $region22: #{tpu_custom_call.1} parent=1 // pred_check
      _
    $region23: #{tpu_custom_call.1} parent=1 // pred_check_branch
      %75 = sbr.rel (0) target = $region25
    $region24: #{tpu_custom_call.1} parent=1 // pred_region
      %76 = dma.done [#allocation3], 256
    $region25: #{tpu_custom_call.1} parent=1 // pred_fallthru
      _
    // Predicated region
    $region26: #{tpu_custom_call.1} parent=1 // pred_check
      _
    $region27: #{tpu_custom_call.1} parent=1 // pred_check_branch
      %78 = sbr.rel (0) target = $region29
    $region28: #{tpu_custom_call.1} parent=1 // pred_region
      %79 = dma.done [#allocation6], 128
    $region29: #{tpu_custom_call.1} parent=1 // pred_fallthru
      _
    // Predicated region
    $region30: #{tpu_custom_call.1} parent=1 // pred_check
      _
    $region31: #{tpu_custom_call.1} parent=1 // pred_check_branch
      %81 = sbr.rel (0) target = $region33
    $region32: #{tpu_custom_call.1} parent=1 // pred_region
      %82 = dma.done [#allocation6], 128
    $region33: #{tpu_custom_call.1} parent=1 // pred_fallthru
      _
    // Predicated region
    $region34: #{tpu_custom_call.1} parent=1 // pred_check
      _
    $region35: #{tpu_custom_call.1} parent=1 // pred_check_branch
      %84 = sbr.rel (0) target = $region37
    $region36: #{tpu_custom_call.1} parent=1 // pred_region
      %85 = dma.done [#allocation9], 8192
    $region37: #{tpu_custom_call.1} parent=1 // pred_fallthru
      _
    %s86 = sadd.s32 0, 0
    %s87 = smul.u32 8, %s86
    %s88 = sadd.s32 0, 0
    %s89 = smul.u32 8, %s88
    %s90 = sadd.s32 0, 0
    %s91 = smul.u32 8, %s90
    %s92 = sadd.s32 0, 0
    %s93 = smul.u32 128, %s92
    %p95 = scmp.eq.s32.totalorder 0, 0
    // Predicated region
    $region38: #{tpu_custom_call.1} parent=1 // pred_check
      %p96 = pneg %p95
    $region39: #{tpu_custom_call.1} parent=1 // pred_check_branch
      %98 = sbr.rel (%p96) target = $region41
    $region40: #{tpu_custom_call.1} parent=1 // pred_region
      %99 = vst [vmem:[#allocation10] sm:$0x3] 0.0
    $region41: #{tpu_custom_call.1} parent=1 // pred_fallthru
      _
    %v100 = vld [vmem:[#allocation2] sm:$0xff]
    %v101 = vld [vmem:[#allocation2 + $0x8] sm:$0xff]
    %v102 = vld [vmem:[#allocation5] sm:$0xff]
    %v104 = vlaneseq
    %v105 = vshrl.u32 %v104, 7
    %v106 = vsub.s32 0, %v105
    %v107 = vrot.slane %v102, %v106
    %v108 = vlaneseq
    %v109 = vshrl.u32 %v108, 7
    %v110 = vsub.s32 1, %v109
    %v111 = vrot.slane %v102, %v110
    %v112 = vlaneseq
    %v113 = vshrl.u32 %v112, 7
    %v114 = vsub.s32 2, %v113
    %v115 = vrot.slane %v102, %v114
    %v116 = vlaneseq
    %v117 = vshrl.u32 %v116, 7
    %v118 = vsub.s32 3, %v117
    %v119 = vrot.slane %v102, %v118
    %v120 = vlaneseq
    %v121 = vshrl.u32 %v120, 7
    %v122 = vsub.s32 4, %v121
    %v123 = vrot.slane %v102, %v122
    %v124 = vlaneseq
    %v125 = vshrl.u32 %v124, 7
    %v126 = vsub.s32 5, %v125
    %v127 = vrot.slane %v102, %v126
    %v128 = vlaneseq
    %v129 = vshrl.u32 %v128, 7
    %v130 = vsub.s32 6, %v129
    %v131 = vrot.slane %v102, %v130
    %v132 = vlaneseq
    %v133 = vshrl.u32 %v132, 7
    %v134 = vsub.s32 7, %v133
    %v135 = vrot.slane %v102, %v134
    %v136 = vcombine.low %v107, %v111
    %v137 = vcombine.low %v115, %v119
    %v139 = vunpack.c.l.s4 1983009808
    %v140 = vunpack.c.0.s8 %v139
    %v141 = vlaneseq
    %v142 = vshrl.u32 %v141, 7
    %v143 = vsub.s32 %v140, %v142
    %v144 = vrot.slane %v136, %v143
    %v146 = vunpack.c.l.s4 1983009808
    %v147 = vunpack.c.0.s8 %v146
    %v148 = vlaneseq
    %v149 = vshrl.u32 %v148, 7
    %v150 = vsub.s32 %v147, %v149
    %v151 = vrot.slane %v137, %v150
    %v152 = vcombine.low %v144, %v151
    %v153 = vcombine.low %v123, %v127
    %v154 = vcombine.low %v131, %v135
    %v156 = vunpack.c.l.s4 1983009808
    %v157 = vunpack.c.0.s8 %v156
    %v158 = vlaneseq
    %v159 = vshrl.u32 %v158, 7
    %v160 = vsub.s32 %v157, %v159
    %v161 = vrot.slane %v153, %v160
    %v163 = vunpack.c.l.s4 1983009808
    %v164 = vunpack.c.0.s8 %v163
    %v165 = vlaneseq
    %v166 = vshrl.u32 %v165, 7
    %v167 = vsub.s32 %v164, %v166
    %v168 = vrot.slane %v154, %v167
    %v169 = vcombine.low %v161, %v168
    %v172 = vsub.f32 %v100, %v152
    %v173 = vsub.f32 %v101, %v169
    %v174 = vld [vmem:[#allocation7] sm:$0xff]
    %v176 = vlaneseq
    %v177 = vshrl.u32 %v176, 7
    %v178 = vsub.s32 0, %v177
    %v179 = vrot.slane %v174, %v178
    %v180 = vlaneseq
    %v181 = vshrl.u32 %v180, 7
    %v182 = vsub.s32 1, %v181
    %v183 = vrot.slane %v174, %v182
    %v184 = vlaneseq
    %v185 = vshrl.u32 %v184, 7
    %v186 = vsub.s32 2, %v185
    %v187 = vrot.slane %v174, %v186
    %v188 = vlaneseq
    %v189 = vshrl.u32 %v188, 7
    %v190 = vsub.s32 3, %v189
    %v191 = vrot.slane %v174, %v190
    %v192 = vlaneseq
    %v193 = vshrl.u32 %v192, 7
    %v194 = vsub.s32 4, %v193
    %v195 = vrot.slane %v174, %v194
    %v196 = vlaneseq
    %v197 = vshrl.u32 %v196, 7
    %v198 = vsub.s32 5, %v197
    %v199 = vrot.slane %v174, %v198
    %v200 = vlaneseq
    %v201 = vshrl.u32 %v200, 7
    %v202 = vsub.s32 6, %v201
    %v203 = vrot.slane %v174, %v202
    %v204 = vlaneseq
    %v205 = vshrl.u32 %v204, 7
    %v206 = vsub.s32 7, %v205
    %v207 = vrot.slane %v174, %v206
    %v208 = vcombine.low %v179, %v183
    %v209 = vcombine.low %v187, %v191
    %v211 = vunpack.c.l.s4 1983009808
    %v212 = vunpack.c.0.s8 %v211
    %v213 = vlaneseq
    %v214 = vshrl.u32 %v213, 7
    %v215 = vsub.s32 %v212, %v214
    %v216 = vrot.slane %v208, %v215
    %v218 = vunpack.c.l.s4 1983009808
    %v219 = vunpack.c.0.s8 %v218
    %v220 = vlaneseq
    %v221 = vshrl.u32 %v220, 7
    %v222 = vsub.s32 %v219, %v221
    %v223 = vrot.slane %v209, %v222
    %v224 = vcombine.low %v216, %v223
    %v225 = vcombine.low %v195, %v199
    %v226 = vcombine.low %v203, %v207
    %v228 = vunpack.c.l.s4 1983009808
    %v229 = vunpack.c.0.s8 %v228
    %v230 = vlaneseq
    %v231 = vshrl.u32 %v230, 7
    %v232 = vsub.s32 %v229, %v231
    %v233 = vrot.slane %v225, %v232
    %v235 = vunpack.c.l.s4 1983009808
    %v236 = vunpack.c.0.s8 %v235
    %v237 = vlaneseq
    %v238 = vshrl.u32 %v237, 7
    %v239 = vsub.s32 %v236, %v238
    %v240 = vrot.slane %v226, %v239
    %v241 = vcombine.low %v233, %v240
    %v244 = vmul.f32 %v172, %v224
    %v245 = vmul.f32 %v173, %v241
    %v248 = vcombine.high %v244, %v244
    %v250 = vunpack.c.l.s4 1983009808
    %v251 = vunpack.c.0.s8 %v250
    %v252 = vlaneseq
    %v253 = vshrl.u32 %v252, 7
    %v254 = vsub.s32 %v251, %v253
    %v255 = vrot.slane %v244, %v254
    %v257 = vunpack.c.l.s4 1983009808
    %v258 = vunpack.c.0.s8 %v257
    %v259 = vlaneseq
    %v260 = vshrl.u32 %v259, 7
    %v261 = vsub.s32 %v258, %v260
    %v262 = vrot.slane %v248, %v261
    %v263 = vcombine.high %v255, %v255
    %v264 = vcombine.high %v262, %v262
    %v265 = vcombine.high %v245, %v245
    %v267 = vunpack.c.l.s4 1983009808
    %v268 = vunpack.c.0.s8 %v267
    %v269 = vlaneseq
    %v270 = vshrl.u32 %v269, 7
    %v271 = vsub.s32 %v268, %v270
    %v272 = vrot.slane %v245, %v271
    %v274 = vunpack.c.l.s4 1983009808
    %v275 = vunpack.c.0.s8 %v274
    %v276 = vlaneseq
    %v277 = vshrl.u32 %v276, 7
    %v278 = vsub.s32 %v275, %v277
    %v279 = vrot.slane %v265, %v278
    %v280 = vcombine.high %v272, %v272
    %v281 = vcombine.high %v279, %v279
    %v290 = vpack.c.bf16 %v255, %v255
    %v291 = vpack.c.bf16 %v263, %v263
    %v292 = vpack.c.bf16 %v262, %v262
    %v293 = vpack.c.bf16 %v264, %v264
    %v294 = vpack.c.bf16 %v272, %v272
    %v295 = vpack.c.bf16 %v280, %v280
    %v296 = vpack.c.bf16 %v279, %v279
    %v297 = vpack.c.bf16 %v281, %v281
    %v298 = vld [vmem:[#allocation8] sm:$0xf]
    %v299 = vld [vmem:[#allocation8 + $0x4] sm:$0xf]
    %v300 = vld [vmem:[#allocation8 + $0x8] sm:$0xf]
    %v301 = vld [vmem:[#allocation8 + $0xc] sm:$0xf]
    %v302 = vld [vmem:[#allocation8 + $0x10] sm:$0xf]
    %v303 = vld [vmem:[#allocation8 + $0x14] sm:$0xf]
    %v304 = vld [vmem:[#allocation8 + $0x18] sm:$0xf]
    %v305 = vld [vmem:[#allocation8 + $0x1c] sm:$0xf]
    %v306 = vld [vmem:[#allocation8 + $0x20] sm:$0xf]
    %v307 = vld [vmem:[#allocation8 + $0x24] sm:$0xf]
    %v308 = vld [vmem:[#allocation8 + $0x28] sm:$0xf]
    %v309 = vld [vmem:[#allocation8 + $0x2c] sm:$0xf]
    %v310 = vld [vmem:[#allocation8 + $0x30] sm:$0xf]
    %v311 = vld [vmem:[#allocation8 + $0x34] sm:$0xf]
    %v312 = vld [vmem:[#allocation8 + $0x38] sm:$0xf]
    %v313 = vld [vmem:[#allocation8 + $0x3c] sm:$0xf]
    %v314 = vld [vmem:[#allocation8 + $0x40] sm:$0xf]
    %v315 = vld [vmem:[#allocation8 + $0x44] sm:$0xf]
    %v316 = vld [vmem:[#allocation8 + $0x48] sm:$0xf]
    %v317 = vld [vmem:[#allocation8 + $0x4c] sm:$0xf]
    %v318 = vld [vmem:[#allocation8 + $0x50] sm:$0xf]
    %v319 = vld [vmem:[#allocation8 + $0x54] sm:$0xf]
    %v320 = vld [vmem:[#allocation8 + $0x58] sm:$0xf]
    %v321 = vld [vmem:[#allocation8 + $0x5c] sm:$0xf]
    %v322 = vld [vmem:[#allocation8 + $0x60] sm:$0xf]
    %v323 = vld [vmem:[#allocation8 + $0x64] sm:$0xf]
    %v324 = vld [vmem:[#allocation8 + $0x68] sm:$0xf]
    %v325 = vld [vmem:[#allocation8 + $0x6c] sm:$0xf]
    %v326 = vld [vmem:[#allocation8 + $0x70] sm:$0xf]
    %v327 = vld [vmem:[#allocation8 + $0x74] sm:$0xf]
    %v328 = vld [vmem:[#allocation8 + $0x78] sm:$0xf]
    %v329 = vld [vmem:[#allocation8 + $0x7c] sm:$0xf]
    %v330 = vld [vmem:[#allocation8 + $0x80] sm:$0xf]
    %v331 = vld [vmem:[#allocation8 + $0x84] sm:$0xf]
    %v332 = vld [vmem:[#allocation8 + $0x88] sm:$0xf]
    %v333 = vld [vmem:[#allocation8 + $0x8c] sm:$0xf]
    %v334 = vld [vmem:[#allocation8 + $0x90] sm:$0xf]
    %v335 = vld [vmem:[#allocation8 + $0x94] sm:$0xf]
    %v336 = vld [vmem:[#allocation8 + $0x98] sm:$0xf]
    %v337 = vld [vmem:[#allocation8 + $0x9c] sm:$0xf]
    %v338 = vld [vmem:[#allocation8 + $0xa0] sm:$0xf]
    %v339 = vld [vmem:[#allocation8 + $0xa4] sm:$0xf]
    %v340 = vld [vmem:[#allocation8 + $0xa8] sm:$0xf]
    %v341 = vld [vmem:[#allocation8 + $0xac] sm:$0xf]
    %v342 = vld [vmem:[#allocation8 + $0xb0] sm:$0xf]
    %v343 = vld [vmem:[#allocation8 + $0xb4] sm:$0xf]
    %v344 = vld [vmem:[#allocation8 + $0xb8] sm:$0xf]
    %v345 = vld [vmem:[#allocation8 + $0xbc] sm:$0xf]
    %v346 = vld [vmem:[#allocation8 + $0xc0] sm:$0xf]
    %v347 = vld [vmem:[#allocation8 + $0xc4] sm:$0xf]
    %v348 = vld [vmem:[#allocation8 + $0xc8] sm:$0xf]
    %v349 = vld [vmem:[#allocation8 + $0xcc] sm:$0xf]
    %v350 = vld [vmem:[#allocation8 + $0xd0] sm:$0xf]
    %v351 = vld [vmem:[#allocation8 + $0xd4] sm:$0xf]
    %v352 = vld [vmem:[#allocation8 + $0xd8] sm:$0xf]
    %v353 = vld [vmem:[#allocation8 + $0xdc] sm:$0xf]
    %v354 = vld [vmem:[#allocation8 + $0xe0] sm:$0xf]
    %v355 = vld [vmem:[#allocation8 + $0xe4] sm:$0xf]
    %v356 = vld [vmem:[#allocation8 + $0xe8] sm:$0xf]
    %v357 = vld [vmem:[#allocation8 + $0xec] sm:$0xf]
    %v358 = vld [vmem:[#allocation8 + $0xf0] sm:$0xf]
    %v359 = vld [vmem:[#allocation8 + $0xf4] sm:$0xf]
    %v360 = vld [vmem:[#allocation8 + $0xf8] sm:$0xf]
    %v361 = vld [vmem:[#allocation8 + $0xfc] sm:$0xf]
    %v362 = vld [vmem:[#allocation8 + $0x100] sm:$0xf]
    %v363 = vld [vmem:[#allocation8 + $0x104] sm:$0xf]
    %v364 = vld [vmem:[#allocation8 + $0x108] sm:$0xf]
    %v365 = vld [vmem:[#allocation8 + $0x10c] sm:$0xf]
    %v366 = vld [vmem:[#allocation8 + $0x110] sm:$0xf]
    %v367 = vld [vmem:[#allocation8 + $0x114] sm:$0xf]
    %v368 = vld [vmem:[#allocation8 + $0x118] sm:$0xf]
    %v369 = vld [vmem:[#allocation8 + $0x11c] sm:$0xf]
    %v370 = vld [vmem:[#allocation8 + $0x120] sm:$0xf]
    %v371 = vld [vmem:[#allocation8 + $0x124] sm:$0xf]
    %v372 = vld [vmem:[#allocation8 + $0x128] sm:$0xf]
    %v373 = vld [vmem:[#allocation8 + $0x12c] sm:$0xf]
    %v374 = vld [vmem:[#allocation8 + $0x130] sm:$0xf]
    %v375 = vld [vmem:[#allocation8 + $0x134] sm:$0xf]
    %v376 = vld [vmem:[#allocation8 + $0x138] sm:$0xf]
    %v377 = vld [vmem:[#allocation8 + $0x13c] sm:$0xf]
    %v378 = vld [vmem:[#allocation8 + $0x140] sm:$0xf]
    %v379 = vld [vmem:[#allocation8 + $0x144] sm:$0xf]
    %v380 = vld [vmem:[#allocation8 + $0x148] sm:$0xf]
    %v381 = vld [vmem:[#allocation8 + $0x14c] sm:$0xf]
    %v382 = vld [vmem:[#allocation8 + $0x150] sm:$0xf]
    %v383 = vld [vmem:[#allocation8 + $0x154] sm:$0xf]
    %v384 = vld [vmem:[#allocation8 + $0x158] sm:$0xf]
    %v385 = vld [vmem:[#allocation8 + $0x15c] sm:$0xf]
    %v386 = vld [vmem:[#allocation8 + $0x160] sm:$0xf]
    %v387 = vld [vmem:[#allocation8 + $0x164] sm:$0xf]
    %v388 = vld [vmem:[#allocation8 + $0x168] sm:$0xf]
    %v389 = vld [vmem:[#allocation8 + $0x16c] sm:$0xf]
    %v390 = vld [vmem:[#allocation8 + $0x170] sm:$0xf]
    %v391 = vld [vmem:[#allocation8 + $0x174] sm:$0xf]
    %v392 = vld [vmem:[#allocation8 + $0x178] sm:$0xf]
    %v393 = vld [vmem:[#allocation8 + $0x17c] sm:$0xf]
    %v394 = vld [vmem:[#allocation8 + $0x180] sm:$0xf]
    %v395 = vld [vmem:[#allocation8 + $0x184] sm:$0xf]
    %v396 = vld [vmem:[#allocation8 + $0x188] sm:$0xf]
    %v397 = vld [vmem:[#allocation8 + $0x18c] sm:$0xf]
    %v398 = vld [vmem:[#allocation8 + $0x190] sm:$0xf]
    %v399 = vld [vmem:[#allocation8 + $0x194] sm:$0xf]
    %v400 = vld [vmem:[#allocation8 + $0x198] sm:$0xf]
    %v401 = vld [vmem:[#allocation8 + $0x19c] sm:$0xf]
    %v402 = vld [vmem:[#allocation8 + $0x1a0] sm:$0xf]
    %v403 = vld [vmem:[#allocation8 + $0x1a4] sm:$0xf]
    %v404 = vld [vmem:[#allocation8 + $0x1a8] sm:$0xf]
    %v405 = vld [vmem:[#allocation8 + $0x1ac] sm:$0xf]
    %v406 = vld [vmem:[#allocation8 + $0x1b0] sm:$0xf]
    %v407 = vld [vmem:[#allocation8 + $0x1b4] sm:$0xf]
    %v408 = vld [vmem:[#allocation8 + $0x1b8] sm:$0xf]
    %v409 = vld [vmem:[#allocation8 + $0x1bc] sm:$0xf]
    %v410 = vld [vmem:[#allocation8 + $0x1c0] sm:$0xf]
    %v411 = vld [vmem:[#allocation8 + $0x1c4] sm:$0xf]
    %v412 = vld [vmem:[#allocation8 + $0x1c8] sm:$0xf]
    %v413 = vld [vmem:[#allocation8 + $0x1cc] sm:$0xf]
    %v414 = vld [vmem:[#allocation8 + $0x1d0] sm:$0xf]
    %v415 = vld [vmem:[#allocation8 + $0x1d4] sm:$0xf]
    %v416 = vld [vmem:[#allocation8 + $0x1d8] sm:$0xf]
    %v417 = vld [vmem:[#allocation8 + $0x1dc] sm:$0xf]
    %v418 = vld [vmem:[#allocation8 + $0x1e0] sm:$0xf]
    %v419 = vld [vmem:[#allocation8 + $0x1e4] sm:$0xf]
    %v420 = vld [vmem:[#allocation8 + $0x1e8] sm:$0xf]
    %v421 = vld [vmem:[#allocation8 + $0x1ec] sm:$0xf]
    %v422 = vld [vmem:[#allocation8 + $0x1f0] sm:$0xf]
    %v423 = vld [vmem:[#allocation8 + $0x1f4] sm:$0xf]
    %v424 = vld [vmem:[#allocation8 + $0x1f8] sm:$0xf]
    %v425 = vld [vmem:[#allocation8 + $0x1fc] sm:$0xf]
    %v554 = vunpack.c.l.b16 %v298
    %v555 = vunpack.c.l.b16 %v299
    %v556 = vunpack.c.l.b16 %v300
    %v557 = vunpack.c.l.b16 %v301
    %v558 = vunpack.c.l.b16 %v302
    %v559 = vunpack.c.l.b16 %v303
    %v560 = vunpack.c.l.b16 %v304
    %v561 = vunpack.c.l.b16 %v305
    %v562 = vunpack.c.l.b16 %v306
    %v563 = vunpack.c.l.b16 %v307
    %v564 = vunpack.c.l.b16 %v308
    %v565 = vunpack.c.l.b16 %v309
    %v566 = vunpack.c.l.b16 %v310
    %v567 = vunpack.c.l.b16 %v311
    %v568 = vunpack.c.l.b16 %v312
    %v569 = vunpack.c.l.b16 %v313
    %v570 = vunpack.c.l.b16 %v314
    %v571 = vunpack.c.l.b16 %v315
    %v572 = vunpack.c.l.b16 %v316
    %v573 = vunpack.c.l.b16 %v317
    %v574 = vunpack.c.l.b16 %v318
    %v575 = vunpack.c.l.b16 %v319
    %v576 = vunpack.c.l.b16 %v320
    %v577 = vunpack.c.l.b16 %v321
    %v578 = vunpack.c.l.b16 %v322
    %v579 = vunpack.c.l.b16 %v323
    %v580 = vunpack.c.l.b16 %v324
    %v581 = vunpack.c.l.b16 %v325
    %v582 = vunpack.c.l.b16 %v326
    %v583 = vunpack.c.l.b16 %v327
    %v584 = vunpack.c.l.b16 %v328
    %v585 = vunpack.c.l.b16 %v329
    %v586 = vunpack.c.l.b16 %v330
    %v587 = vunpack.c.l.b16 %v331
    %v588 = vunpack.c.l.b16 %v332
    %v589 = vunpack.c.l.b16 %v333
    %v590 = vunpack.c.l.b16 %v334
    %v591 = vunpack.c.l.b16 %v335
    %v592 = vunpack.c.l.b16 %v336
    %v593 = vunpack.c.l.b16 %v337
    %v594 = vunpack.c.l.b16 %v338
    %v595 = vunpack.c.l.b16 %v339
    %v596 = vunpack.c.l.b16 %v340
    %v597 = vunpack.c.l.b16 %v341
    %v598 = vunpack.c.l.b16 %v342
    %v599 = vunpack.c.l.b16 %v343
    %v600 = vunpack.c.l.b16 %v344
    %v601 = vunpack.c.l.b16 %v345
    %v602 = vunpack.c.l.b16 %v346
    %v603 = vunpack.c.l.b16 %v347
    %v604 = vunpack.c.l.b16 %v348
    %v605 = vunpack.c.l.b16 %v349
    %v606 = vunpack.c.l.b16 %v350
    %v607 = vunpack.c.l.b16 %v351
    %v608 = vunpack.c.l.b16 %v352
    %v609 = vunpack.c.l.b16 %v353
    %v610 = vunpack.c.l.b16 %v354
    %v611 = vunpack.c.l.b16 %v355
    %v612 = vunpack.c.l.b16 %v356
    %v613 = vunpack.c.l.b16 %v357
    %v614 = vunpack.c.l.b16 %v358
    %v615 = vunpack.c.l.b16 %v359
    %v616 = vunpack.c.l.b16 %v360
    %v617 = vunpack.c.l.b16 %v361
    %v618 = vunpack.c.l.b16 %v362
    %v619 = vunpack.c.l.b16 %v363
    %v620 = vunpack.c.l.b16 %v364
    %v621 = vunpack.c.l.b16 %v365
    %v622 = vunpack.c.l.b16 %v366
    %v623 = vunpack.c.l.b16 %v367
    %v624 = vunpack.c.l.b16 %v368
    %v625 = vunpack.c.l.b16 %v369
    %v626 = vunpack.c.l.b16 %v370
    %v627 = vunpack.c.l.b16 %v371
    %v628 = vunpack.c.l.b16 %v372
    %v629 = vunpack.c.l.b16 %v373
    %v630 = vunpack.c.l.b16 %v374
    %v631 = vunpack.c.l.b16 %v375
    %v632 = vunpack.c.l.b16 %v376
    %v633 = vunpack.c.l.b16 %v377
    %v634 = vunpack.c.l.b16 %v378
    %v635 = vunpack.c.l.b16 %v379
    %v636 = vunpack.c.l.b16 %v380
    %v637 = vunpack.c.l.b16 %v381
    %v638 = vunpack.c.l.b16 %v382
    %v639 = vunpack.c.l.b16 %v383
    %v640 = vunpack.c.l.b16 %v384
    %v641 = vunpack.c.l.b16 %v385
    %v642 = vunpack.c.l.b16 %v386
    %v643 = vunpack.c.l.b16 %v387
    %v644 = vunpack.c.l.b16 %v388
    %v645 = vunpack.c.l.b16 %v389
    %v646 = vunpack.c.l.b16 %v390
    %v647 = vunpack.c.l.b16 %v391
    %v648 = vunpack.c.l.b16 %v392
    %v649 = vunpack.c.l.b16 %v393
    %v650 = vunpack.c.l.b16 %v394
    %v651 = vunpack.c.l.b16 %v395
    %v652 = vunpack.c.l.b16 %v396
    %v653 = vunpack.c.l.b16 %v397
    %v654 = vunpack.c.l.b16 %v398
    %v655 = vunpack.c.l.b16 %v399
    %v656 = vunpack.c.l.b16 %v400
    %v657 = vunpack.c.l.b16 %v401
    %v658 = vunpack.c.l.b16 %v402
    %v659 = vunpack.c.l.b16 %v403
    %v660 = vunpack.c.l.b16 %v404
    %v661 = vunpack.c.l.b16 %v405
    %v662 = vunpack.c.l.b16 %v406
    %v663 = vunpack.c.l.b16 %v407
    %v664 = vunpack.c.l.b16 %v408
    %v665 = vunpack.c.l.b16 %v409
    %v666 = vunpack.c.l.b16 %v410
    %v667 = vunpack.c.l.b16 %v411
    %v668 = vunpack.c.l.b16 %v412
    %v669 = vunpack.c.l.b16 %v413
    %v670 = vunpack.c.l.b16 %v414
    %v671 = vunpack.c.l.b16 %v415
    %v672 = vunpack.c.l.b16 %v416
    %v673 = vunpack.c.l.b16 %v417
    %v674 = vunpack.c.l.b16 %v418
    %v675 = vunpack.c.l.b16 %v419
    %v676 = vunpack.c.l.b16 %v420
    %v677 = vunpack.c.l.b16 %v421
    %v678 = vunpack.c.l.b16 %v422
    %v679 = vunpack.c.l.b16 %v423
    %v680 = vunpack.c.l.b16 %v424
    %v681 = vunpack.c.l.b16 %v425
    %v682 = vpack.c.b16 %v555, %v554
    %v683 = vpack.c.b16 %v557, %v556
    %v684 = vpack.c.b16 %v559, %v558
    %v685 = vpack.c.b16 %v561, %v560
    %v686 = vpack.c.b16 %v563, %v562
    %v687 = vpack.c.b16 %v565, %v564
    %v688 = vpack.c.b16 %v567, %v566
    %v689 = vpack.c.b16 %v569, %v568
    %v690 = vpack.c.b16 %v571, %v570
    %v691 = vpack.c.b16 %v573, %v572
    %v692 = vpack.c.b16 %v575, %v574
    %v693 = vpack.c.b16 %v577, %v576
    %v694 = vpack.c.b16 %v579, %v578
    %v695 = vpack.c.b16 %v581, %v580
    %v696 = vpack.c.b16 %v583, %v582
    %v697 = vpack.c.b16 %v585, %v584
    %v698 = vpack.c.b16 %v587, %v586
    %v699 = vpack.c.b16 %v589, %v588
    %v700 = vpack.c.b16 %v591, %v590
    %v701 = vpack.c.b16 %v593, %v592
    %v702 = vpack.c.b16 %v595, %v594
    %v703 = vpack.c.b16 %v597, %v596
    %v704 = vpack.c.b16 %v599, %v598
    %v705 = vpack.c.b16 %v601, %v600
    %v706 = vpack.c.b16 %v603, %v602
    %v707 = vpack.c.b16 %v605, %v604
    %v708 = vpack.c.b16 %v607, %v606
    %v709 = vpack.c.b16 %v609, %v608
    %v710 = vpack.c.b16 %v611, %v610
    %v711 = vpack.c.b16 %v613, %v612
    %v712 = vpack.c.b16 %v615, %v614
    %v713 = vpack.c.b16 %v617, %v616
    %v714 = vpack.c.b16 %v619, %v618
    %v715 = vpack.c.b16 %v621, %v620
    %v716 = vpack.c.b16 %v623, %v622
    %v717 = vpack.c.b16 %v625, %v624
    %v718 = vpack.c.b16 %v627, %v626
    %v719 = vpack.c.b16 %v629, %v628
    %v720 = vpack.c.b16 %v631, %v630
    %v721 = vpack.c.b16 %v633, %v632
    %v722 = vpack.c.b16 %v635, %v634
    %v723 = vpack.c.b16 %v637, %v636
    %v724 = vpack.c.b16 %v639, %v638
    %v725 = vpack.c.b16 %v641, %v640
    %v726 = vpack.c.b16 %v643, %v642
    %v727 = vpack.c.b16 %v645, %v644
    %v728 = vpack.c.b16 %v647, %v646
    %v729 = vpack.c.b16 %v649, %v648
    %v730 = vpack.c.b16 %v651, %v650
    %v731 = vpack.c.b16 %v653, %v652
    %v732 = vpack.c.b16 %v655, %v654
    %v733 = vpack.c.b16 %v657, %v656
    %v734 = vpack.c.b16 %v659, %v658
    %v735 = vpack.c.b16 %v661, %v660
    %v736 = vpack.c.b16 %v663, %v662
    %v737 = vpack.c.b16 %v665, %v664
    %v738 = vpack.c.b16 %v667, %v666
    %v739 = vpack.c.b16 %v669, %v668
    %v740 = vpack.c.b16 %v671, %v670
    %v741 = vpack.c.b16 %v673, %v672
    %v742 = vpack.c.b16 %v675, %v674
    %v743 = vpack.c.b16 %v677, %v676
    %v744 = vpack.c.b16 %v679, %v678
    %v745 = vpack.c.b16 %v681, %v680
    %810 = vmatprep.subr.bf16.mxu0 0
    %811 = vmatpush1.bf16.msra.mxu0 %v682
    %812 = vmatprep.subr.bf16.mxu0 0
    %813 = vmatpush1.bf16.msra.mxu0 %v683
    %814 = vmatprep.subr.bf16.mxu0 0
    %815 = vmatpush1.bf16.msra.mxu0 %v684
    %816 = vmatprep.subr.bf16.mxu0 0
    %817 = vmatpush1.bf16.msra.mxu0 %v685
    %818 = vmatprep.subr.bf16.mxu0 0
    %819 = vmatpush1.bf16.msra.mxu0 %v686
    %820 = vmatprep.subr.bf16.mxu0 0
    %821 = vmatpush1.bf16.msra.mxu0 %v687
    %822 = vmatprep.subr.bf16.mxu0 0
    %823 = vmatpush1.bf16.msra.mxu0 %v688
    %824 = vmatprep.subr.bf16.mxu0 0
    %825 = vmatpush1.bf16.msra.mxu0 %v689
    %826 = vmatprep.subr.bf16.mxu0 0
    %827 = vmatpush1.bf16.msra.mxu0 %v690
    %828 = vmatprep.subr.bf16.mxu0 0
    %829 = vmatpush1.bf16.msra.mxu0 %v691
    %830 = vmatprep.subr.bf16.mxu0 0
    %831 = vmatpush1.bf16.msra.mxu0 %v692
    %832 = vmatprep.subr.bf16.mxu0 0
    %833 = vmatpush1.bf16.msra.mxu0 %v693
    %834 = vmatprep.subr.bf16.mxu0 0
    %835 = vmatpush1.bf16.msra.mxu0 %v694
    %836 = vmatprep.subr.bf16.mxu0 0
    %837 = vmatpush1.bf16.msra.mxu0 %v695
    %838 = vmatprep.subr.bf16.mxu0 0
    %839 = vmatpush1.bf16.msra.mxu0 %v696
    %840 = vmatprep.subr.bf16.mxu0 0
    %841 = vmatpush1.bf16.msra.mxu0 %v697
    %842 = vmatprep.mubr.bf16.mxu0 %v291
    %843 = vmatmul.mubr.bf16.gmra.mrb[0].mxu0 %v290
    %v844 = vpop.f32.mrb[0].mxu0
    %v845 = vadd.f32 0.0, %v844
    %v846 = vpop.f32.mrb[0].mxu0
    %v847 = vpop.f32.mrb[0].mxu0
    %v848 = vpop.f32.mrb[0].mxu0
    %849 = vdwg.mxu0
    %850 = vmatprep.subr.bf16.mxu0 0
    %851 = vmatpush1.bf16.msra.mxu0 %v698
    %852 = vmatprep.subr.bf16.mxu0 0
    %853 = vmatpush1.bf16.msra.mxu0 %v699
    %854 = vmatprep.subr.bf16.mxu0 0
    %855 = vmatpush1.bf16.msra.mxu0 %v700
    %856 = vmatprep.subr.bf16.mxu0 0
    %857 = vmatpush1.bf16.msra.mxu0 %v701
    %858 = vmatprep.subr.bf16.mxu0 0
    %859 = vmatpush1.bf16.msra.mxu0 %v702
    %860 = vmatprep.subr.bf16.mxu0 0
    %861 = vmatpush1.bf16.msra.mxu0 %v703
    %862 = vmatprep.subr.bf16.mxu0 0
    %863 = vmatpush1.bf16.msra.mxu0 %v704
    %864 = vmatprep.subr.bf16.mxu0 0
    %865 = vmatpush1.bf16.msra.mxu0 %v705
    %866 = vmatprep.subr.bf16.mxu0 0
    %867 = vmatpush1.bf16.msra.mxu0 %v706
    %868 = vmatprep.subr.bf16.mxu0 0
    %869 = vmatpush1.bf16.msra.mxu0 %v707
    %870 = vmatprep.subr.bf16.mxu0 0
    %871 = vmatpush1.bf16.msra.mxu0 %v708
    %872 = vmatprep.subr.bf16.mxu0 0
    %873 = vmatpush1.bf16.msra.mxu0 %v709
    %874 = vmatprep.subr.bf16.mxu0 0
    %875 = vmatpush1.bf16.msra.mxu0 %v710
    %876 = vmatprep.subr.bf16.mxu0 0
    %877 = vmatpush1.bf16.msra.mxu0 %v711
    %878 = vmatprep.subr.bf16.mxu0 0
    %879 = vmatpush1.bf16.msra.mxu0 %v712
    %880 = vmatprep.subr.bf16.mxu0 0
    %881 = vmatpush1.bf16.msra.mxu0 %v713
    %882 = vmatprep.mubr.bf16.mxu0 %v293
    %883 = vmatmul.mubr.bf16.gmra.mrb[0].mxu0 %v292
    %v884 = vpop.f32.mrb[0].mxu0
    %v885 = vadd.f32 %v845, %v884
    %v886 = vpop.f32.mrb[0].mxu0
    %v887 = vpop.f32.mrb[0].mxu0
    %v888 = vpop.f32.mrb[0].mxu0
    %889 = vdwg.mxu0
    %890 = vmatprep.subr.bf16.mxu0 0
    %891 = vmatpush1.bf16.msra.mxu0 %v714
    %892 = vmatprep.subr.bf16.mxu0 0
    %893 = vmatpush1.bf16.msra.mxu0 %v715
    %894 = vmatprep.subr.bf16.mxu0 0
    %895 = vmatpush1.bf16.msra.mxu0 %v716
    %896 = vmatprep.subr.bf16.mxu0 0
    %897 = vmatpush1.bf16.msra.mxu0 %v717
    %898 = vmatprep.subr.bf16.mxu0 0
    %899 = vmatpush1.bf16.msra.mxu0 %v718
    %900 = vmatprep.subr.bf16.mxu0 0
    %901 = vmatpush1.bf16.msra.mxu0 %v719
    %902 = vmatprep.subr.bf16.mxu0 0
    %903 = vmatpush1.bf16.msra.mxu0 %v720
    %904 = vmatprep.subr.bf16.mxu0 0
    %905 = vmatpush1.bf16.msra.mxu0 %v721
    %906 = vmatprep.subr.bf16.mxu0 0
    %907 = vmatpush1.bf16.msra.mxu0 %v722
    %908 = vmatprep.subr.bf16.mxu0 0
    %909 = vmatpush1.bf16.msra.mxu0 %v723
    %910 = vmatprep.subr.bf16.mxu0 0
    %911 = vmatpush1.bf16.msra.mxu0 %v724
    %912 = vmatprep.subr.bf16.mxu0 0
    %913 = vmatpush1.bf16.msra.mxu0 %v725
    %914 = vmatprep.subr.bf16.mxu0 0
    %915 = vmatpush1.bf16.msra.mxu0 %v726
    %916 = vmatprep.subr.bf16.mxu0 0
    %917 = vmatpush1.bf16.msra.mxu0 %v727
    %918 = vmatprep.subr.bf16.mxu0 0
    %919 = vmatpush1.bf16.msra.mxu0 %v728
    %920 = vmatprep.subr.bf16.mxu0 0
    %921 = vmatpush1.bf16.msra.mxu0 %v729
    %922 = vmatprep.mubr.bf16.mxu0 %v295
    %923 = vmatmul.mubr.bf16.gmra.mrb[0].mxu0 %v294
    %v924 = vpop.f32.mrb[0].mxu0
    %v925 = vadd.f32 %v885, %v924
    %v926 = vpop.f32.mrb[0].mxu0
    %v927 = vpop.f32.mrb[0].mxu0
    %v928 = vpop.f32.mrb[0].mxu0
    %929 = vdwg.mxu0
    %930 = vmatprep.subr.bf16.mxu0 0
    %931 = vmatpush1.bf16.msra.mxu0 %v730
    %932 = vmatprep.subr.bf16.mxu0 0
    %933 = vmatpush1.bf16.msra.mxu0 %v731
    %934 = vmatprep.subr.bf16.mxu0 0
    %935 = vmatpush1.bf16.msra.mxu0 %v732
    %936 = vmatprep.subr.bf16.mxu0 0
    %937 = vmatpush1.bf16.msra.mxu0 %v733
    %938 = vmatprep.subr.bf16.mxu0 0
    %939 = vmatpush1.bf16.msra.mxu0 %v734
    %940 = vmatprep.subr.bf16.mxu0 0
    %941 = vmatpush1.bf16.msra.mxu0 %v735
    %942 = vmatprep.subr.bf16.mxu0 0
    %943 = vmatpush1.bf16.msra.mxu0 %v736
    %944 = vmatprep.subr.bf16.mxu0 0
    %945 = vmatpush1.bf16.msra.mxu0 %v737
    %946 = vmatprep.subr.bf16.mxu0 0
    %947 = vmatpush1.bf16.msra.mxu0 %v738
    %948 = vmatprep.subr.bf16.mxu0 0
    %949 = vmatpush1.bf16.msra.mxu0 %v739
    %950 = vmatprep.subr.bf16.mxu0 0
    %951 = vmatpush1.bf16.msra.mxu0 %v740
    %952 = vmatprep.subr.bf16.mxu0 0
    %953 = vmatpush1.bf16.msra.mxu0 %v741
    %954 = vmatprep.subr.bf16.mxu0 0
    %955 = vmatpush1.bf16.msra.mxu0 %v742
    %956 = vmatprep.subr.bf16.mxu0 0
    %957 = vmatpush1.bf16.msra.mxu0 %v743
    %958 = vmatprep.subr.bf16.mxu0 0
    %959 = vmatpush1.bf16.msra.mxu0 %v744
    %960 = vmatprep.subr.bf16.mxu0 0
    %961 = vmatpush1.bf16.msra.mxu0 %v745
    %962 = vmatprep.mubr.bf16.mxu0 %v297
    %963 = vmatmul.mubr.bf16.gmra.mrb[0].mxu0 %v296
    %v964 = vpop.f32.mrb[0].mxu0
    %v965 = vadd.f32 %v925, %v964
    %v966 = vpop.f32.mrb[0].mxu0
    %v967 = vpop.f32.mrb[0].mxu0
    %v968 = vpop.f32.mrb[0].mxu0
    %969 = vdwg.mxu0
    %v970 = vld [vmem:[#allocation10] sm:$0x3]
    %v971 = vadd.f32 %v970, %v965
    %972 = vst [vmem:[#allocation10] sm:$0x3] %v971
    %p973 = scmp.eq.s32.totalorder 0, 0
    %p974 = pnand %p95, %p973
    %p975 = pneg %p974
    // Predicated region
    $region42: #{tpu_custom_call.1} parent=1 // pred_check
      _
    $region43: #{tpu_custom_call.1} parent=1 // pred_check_branch
      %977 = sbr.rel (%p974) target = $region45
    $region44: #{tpu_custom_call.1} parent=1 // pred_region
      %v978 = vld [vmem:[#allocation10] sm:$0x3]
      %v979 = vld [vmem:[%s4] sm:$0x1]
      %v981 = vlaneseq
      %v982 = vshrl.u32 %v981, 7
      %v983 = vsub.s32 0, %v982
      %v984 = vrot.slane %v979, %v983
      %v986 = vadd.f32 %v978, %v984
      %987 = vst [vmem:[#allocation10] sm:$0x3] %v986
    $region45: #{tpu_custom_call.1} parent=1 // pred_fallthru
      _
    // Predicated region
    $region46: #{tpu_custom_call.1} parent=1 // pred_check
      _
    $region47: #{tpu_custom_call.1} parent=1 // pred_check_branch
      %989 = sbr.rel (0) target = $region49
    $region48: #{tpu_custom_call.1} parent=1 // pred_region
      %s991 = ssub.s32 32, 32
      %992 = vsyncadd [#allocation4], %s991
      %s994 = sshll.u32 [#allocation10], 4
      %s995 = int_to_ptr.vmem [resolvable:$true] %s994
      %997 = dma.vmem_to_hbm [thread:$0]  %s995, 32, %s5, [#allocation4]
    $region49: #{tpu_custom_call.1} parent=1 // pred_fallthru
      _
    // Predicated region
    $region50: #{tpu_custom_call.1} parent=1 // pred_check
      _
    $region51: #{tpu_custom_call.1} parent=1 // pred_check_branch
      %999 = sbr.rel (0) target = $region53
    $region52: #{tpu_custom_call.1} parent=1 // pred_region
      %1000 = dma.done [#allocation4], 32
    $region53: #{tpu_custom_call.1} parent=1 // pred_fallthru
      _
    %1001 = vsyncpa [#allocation3], 1
    %1002 = vsyncpa [#allocation6], 1
    %1003 = vsyncpa [#allocation9], 1
    %1004 = vsyncpa [#allocation4], 1

</llo_original>
